<compile_context>
chip_gen: v7x
topology: tpu7x:2x2x1
jax: 0.10.0
libtpu: 0.0.40
codegen_flags: <defaults>
</compile_context>

<pallas_src>
import functools

import jax
import jax.numpy as jnp
from jax.experimental import pallas as pl
from jax.experimental.pallas import tpu as pltpu

LANES = 128                  # vreg lane width
MAX_ROW_TILE = 4096          # (4096,128) f32 = 2 MiB/input/buffer; 8 MiB double-buffered
ROW_CHUNK = 64               # inner accumulation chunk: 8 f32 vregs per operand
VMEM_LIMIT_BYTES = 32 * 1024 * 1024   # explicit headroom (v5e scoped default is 16 MiB)


def _num_tensorcores():
    """2 on v7x (2 TensorCores/chip), 1 on v5e/v6e (grid is a sequential loop there)."""
    try:
        kind = jax.devices()[0].device_kind.lower()
    except Exception:
        return 1
    return 2 if "v7" in kind else 1


def _sse_partial_kernel(o_ref, t_ref, partial_ref, *, rows, row_tile, chunk,
                        tiles_per_slice, mask_tail):
    """Accumulates per-(sublane, lane) partial sums of (o - t)^2 into partial_ref."""
    j = pl.program_id(1)  # reduction ('arbitrary') axis

    @pl.when(j == 0)
    def _():
        partial_ref[...] = jnp.zeros_like(partial_ref)

    num_chunks = row_tile // chunk

    def _accumulate(masked, row_start):
        # Chunked accumulation keeps the f32 temporaries vreg-sized (no tile-sized
        # d/sq VMEM scratch), carried through the loop in registers.
        def body(k, acc):
            r0 = pl.multiple_of(k * chunk, chunk)
            x = o_ref[pl.ds(r0, chunk), :].astype(jnp.float32)
            y = t_ref[pl.ds(r0, chunk), :].astype(jnp.float32)
            d = x - y
            sq = d * d
            if masked:
                local = jax.lax.broadcasted_iota(jnp.int32, (chunk, LANES), 0)
                sq = jnp.where(row_start + r0 + local < rows, sq, 0.0)
            # Fold the (chunk, 128) chunk into a vreg-shaped (8, 128) partial: pure
            # VPU adds, no XLU / scalar dependency chain in the hot loop.
            return acc + jnp.sum(sq.reshape(chunk // 8, 8, LANES), axis=0)

        acc = jax.lax.fori_loop(0, num_chunks, body,
                                jnp.zeros((8, LANES), jnp.float32),
                                unroll=min(4, num_chunks))
        partial_ref[...] += acc

    if mask_tail:
        row_start = (pl.program_id(0) * tiles_per_slice + j) * row_tile

        # Hot path: fully in-bounds tile -> no iota/compare/select at all.
        @pl.when(row_start + row_tile <= rows)
        def _():
            _accumulate(False, row_start)

        # Tail tile only: mask rows past the logical end of the input.
        @pl.when(jnp.logical_and(row_start < rows, row_start + row_tile > rows))
        def _():
            _accumulate(True, row_start)
        # row_start >= rows (clamped duplicate tile, 2-slice path only): contributes
        # nothing -> skip all compute.
    else:
        _accumulate(False, 0)


def embedder_loss(outputs, targets):
    """Returns (loss_only, loss) as f32 scalars, matching EmbedderLoss.forward."""
    assert outputs.shape == targets.shape
    n_total = outputs.size

    o_flat = jnp.ravel(outputs)   # native dtype: no f32 cast / extra HBM pass in wrapper
    t_flat = jnp.ravel(targets)

    rows = max(pl.cdiv(n_total, LANES), 8)
    padded = rows * LANES
    if padded != n_total:
        # Only when n_total is not a multiple of 128 (or tiny); the zero pad contributes
        # nothing to the SSE.  Ragged ROW counts are handled by the in-kernel mask.
        o_flat = jnp.pad(o_flat, (0, padded - n_total))
        t_flat = jnp.pad(t_flat, (0, padded - n_total))
    o2 = o_flat.reshape(rows, LANES)
    t2 = t_flat.reshape(rows, LANES)

    # Sub-32-bit dtypes pack 2/4 rows per sublane: keep the row tile a multiple of the
    # packed granule (16 for bf16, 32 for 8-bit) to avoid relayouts.
    itemsize = jnp.dtype(outputs.dtype).itemsize
    granule = 8 * max(1, 4 // max(1, itemsize))
    row_tile = min(MAX_ROW_TILE, (rows // granule) * granule)
    if row_tile == 0:
        row_tile = (rows // 8) * 8            # rows >= 8 by construction
    chunk = ROW_CHUNK
    while row_tile % chunk:
        chunk //= 2                           # row_tile is a multiple of 8 -> terminates at >=8

    num_tiles = pl.cdiv(rows, row_tile)
    num_slices = min(_num_tensorcores(), num_tiles)
    tiles_per_slice = pl.cdiv(num_tiles, num_slices)
    covered_tiles = num_slices * tiles_per_slice
    mask_tail = (num_tiles * row_tile != rows) or (covered_tiles != num_tiles)

    if covered_tiles == num_tiles:
        def in_idx(s, j):
            return (s * tiles_per_slice + j, 0)
    else:
        # Only possible on the 2-slice (v7x) path: clamp the overshoot to the last valid
        # tile; the duplicated tile is skipped entirely inside the kernel.
        def in_idx(s, j):
            return (jnp.minimum(s * tiles_per_slice + j, num_tiles - 1), 0)

    kernel = functools.partial(
        _sse_partial_kernel, rows=rows, row_tile=row_tile, chunk=chunk,
        tiles_per_slice=tiles_per_slice, mask_tail=mask_tail)

    if num_slices > 1:
        # v7x: genuinely shard the slice axis across the two TensorCores.
        slice_sem = getattr(pltpu, "CORE_PARALLEL", pltpu.PARALLEL)
    else:
        slice_sem = pltpu.ARBITRARY

    bytes_accessed = (o2.size * jnp.dtype(o2.dtype).itemsize
                      + t2.size * jnp.dtype(t2.dtype).itemsize
                      + num_slices * 8 * LANES * 4)

    partials = pl.pallas_call(
        kernel,
        out_shape=jax.ShapeDtypeStruct((num_slices * 8, LANES), jnp.float32),
        grid_spec=pltpu.PrefetchScalarGridSpec(
            num_scalar_prefetch=0,
            grid=(num_slices, tiles_per_slice),
            in_specs=[
                pl.BlockSpec((row_tile, LANES), in_idx),
                pl.BlockSpec((row_tile, LANES), in_idx),
            ],
            out_specs=pl.BlockSpec((8, LANES), lambda s, j: (s, 0)),
        ),
        compiler_params=pltpu.CompilerParams(
            dimension_semantics=(slice_sem, pltpu.ARBITRARY),
            vmem_limit_bytes=VMEM_LIMIT_BYTES,
        ),
        cost_estimate=pl.CostEstimate(
            flops=3 * n_total, transcendentals=0, bytes_accessed=bytes_accessed),
    )(o2, t2)

    # Tiny epilogue (one small fused XLA op): reduce the (num_slices*8, 128) partials,
    # divide by N, 10*sqrt(mse + 1e-10).
    sse = jnp.sum(partials, dtype=jnp.float32)
    mse = sse / jnp.float32(n_total)
    loss = jnp.float32(10.0) * jnp.sqrt(mse + jnp.float32(1e-10))
    return mse, loss


if __name__ == "__main__":
    key = jax.random.PRNGKey(0)
    fn = jax.jit(embedder_loss)

    def reference(o, t):
        mse = jnp.mean((o.astype(jnp.float32) - t.astype(jnp.float32)) ** 2)
        return mse, 10.0 * jnp.sqrt(mse + 1e-10)

    cases = [
        ((2, 4, 16, 16), jnp.float32),    # primary: single tile, no masking
        ((2, 4, 16, 16), jnp.bfloat16),   # native sub-32-bit streaming, 16-row granule
        ((2, 3, 40, 40), jnp.float32),    # ragged rows -> gated tail mask
        ((2, 4, 15, 15), jnp.float32),    # count not a multiple of 128 -> small pad path
        ((2, 5, 168, 160), jnp.float32),  # partial edge block + masked tail tile
        ((4, 8, 96, 128), jnp.float32),   # multi-chunk fori_loop inside one big tile
    ]
    for i, (shape, dtype) in enumerate(cases):
        k1, k2 = jax.random.split(jax.random.fold_in(key, i))
        o = jax.random.normal(k1, shape, dtype=jnp.float32).astype(dtype)
        t = jax.random.normal(k2, shape, dtype=jnp.float32).astype(dtype)
        loss_only, loss = fn(o, t)
        jax.block_until_ready((loss_only, loss))
        ref_mse, ref_loss = reference(o, t)
        assert jnp.allclose(loss_only, ref_mse, rtol=1e-5, atol=1e-6), (
            shape, dtype, loss_only, ref_mse)
        assert jnp.allclose(loss, ref_loss, rtol=1e-5, atol=1e-6), (
            shape, dtype, loss, ref_loss)

    print("KERNEL_OK")
</pallas_src>

<mosaic_0001>
module attributes {stable_mosaic.version = 11 : i64} {
  func.func @_sse_partial_kernel(%arg0: i32, %arg1: i32, %arg2: memref<16x128xf32, #tpu.memory_space<vmem>>, %arg3: memref<16x128xf32, #tpu.memory_space<vmem>>, %arg4: memref<8x128xf32, #tpu.memory_space<vmem>>) attributes {dimension_semantics = [#tpu.dimension_semantics<arbitrary>, #tpu.dimension_semantics<arbitrary>], iteration_bounds = array<i64: 1, 1>, scalar_prefetch = 0 : i64, scratch_operands = 0 : i64, tpu.core_type = #tpu.core_type<tc>, window_params = [{transform_indices = @transform_0, window_bounds = array<i64: 16, 128>}, {transform_indices = @transform_1, window_bounds = array<i64: 16, 128>}, {transform_indices = @transform_2, window_bounds = array<i64: 8, 128>}]} {
    %c0_i32 = arith.constant 0 : i32
    %0 = arith.cmpi eq, %arg1, %c0_i32 : i32
    %1 = arith.extui %0 : i1 to i32
    %c0_i32_0 = arith.constant 0 : i32
    %2 = arith.cmpi ne, %1, %c0_i32_0 : i32
    scf.if %2 {
      %cst_8 = arith.constant 0.000000e+00 : f32
      %18 = vector.broadcast %cst_8 : f32 to vector<8x128xf32>
      %c0_9 = arith.constant 0 : index
      %c0_10 = arith.constant 0 : index
      %19 = vector.load %arg4[%c0_9, %c0_10] : memref<8x128xf32, #tpu.memory_space<vmem>>, vector<8x128xf32>
      tpu.vector_store %arg4[%c0_9, %c0_10], %18 {strides = array<i32>} : memref<8x128xf32, #tpu.memory_space<vmem>>, vector<8x128xf32>,
    } else {
    }
    %cst = arith.constant 0.000000e+00 : f32
    %3 = vector.broadcast %cst : f32 to vector<8x128xf32>
    %c0_i32_1 = arith.constant 0 : i32
    %c16_i32 = arith.constant 16 : i32
    %4 = arith.muli %c0_i32_1, %c16_i32 : i32
    %5 = tpu.assume_multiple %4, 16 : i32
    %6 = arith.index_cast %5 : i32 to index
    %c0 = arith.constant 0 : index
    %7 = vector.load %arg2[%6, %c0] : memref<16x128xf32, #tpu.memory_space<vmem>>, vector<16x128xf32>
    %8 = arith.index_cast %5 : i32 to index
    %c0_2 = arith.constant 0 : index
    %9 = vector.load %arg3[%8, %c0_2] : memref<16x128xf32, #tpu.memory_space<vmem>>, vector<16x128xf32>
    %10 = arith.subf %7, %9 : vector<16x128xf32>
    %11 = arith.mulf %10, %10 : vector<16x128xf32>
    %12 = vector.shape_cast %11 : vector<16x128xf32> to vector<2x8x128xf32>
    %cst_3 = arith.constant dense<0.000000e+00> : vector<8x128xf32>
    %13 = vector.multi_reduction <add>, %12, %cst_3 [0] : vector<2x8x128xf32> to vector<8x128xf32>
    %14 = arith.addf %3, %13 : vector<8x128xf32>
    %c1_i32 = arith.constant 1 : i32
    %c0_4 = arith.constant 0 : index
    %c0_5 = arith.constant 0 : index
    %15 = vector.load %arg4[%c0_4, %c0_5] : memref<8x128xf32, #tpu.memory_space<vmem>>, vector<8x128xf32>
    %16 = arith.addf %15, %14 : vector<8x128xf32>
    %c0_6 = arith.constant 0 : index
    %c0_7 = arith.constant 0 : index
    %17 = vector.load %arg4[%c0_6, %c0_7] : memref<8x128xf32, #tpu.memory_space<vmem>>, vector<8x128xf32>
    tpu.vector_store %arg4[%c0_6, %c0_7], %16 {strides = array<i32>} : memref<8x128xf32, #tpu.memory_space<vmem>>, vector<8x128xf32>,
    return
  }
  func.func @transform_0(%arg0: i32, %arg1: i32) -> (i32, i32) {
    %c1_i32 = arith.constant 1 : i32
    %0 = arith.muli %arg0, %c1_i32 : i32
    %1 = arith.addi %0, %arg1 : i32
    %c0_i32 = arith.constant 0 : i32
    %c0_i32_0 = arith.constant 0 : i32
    return %1, %c0_i32 : i32, i32
  }
  func.func @transform_1(%arg0: i32, %arg1: i32) -> (i32, i32) {
    %c1_i32 = arith.constant 1 : i32
    %0 = arith.muli %arg0, %c1_i32 : i32
    %1 = arith.addi %0, %arg1 : i32
    %c0_i32 = arith.constant 0 : i32
    %c0_i32_0 = arith.constant 0 : i32
    return %1, %c0_i32 : i32, i32
  }
  func.func @transform_2(%arg0: i32, %arg1: i32) -> (i32, i32) {
    %c0_i32 = arith.constant 0 : i32
    %c0_i32_0 = arith.constant 0 : i32
    return %arg0, %c0_i32 : i32, i32
  }
}

</mosaic_0001>

<llo_original>
// kernel: embedder_loss.1
$region0: #{embedder_loss.1}
  #allocation0 [shape = 'u32[]', space=smem, size = 0x4, offset = 0x4, fixed_abs, tag = 'smem constant byte address 0x4 - core index']
  #allocation1 [shape = 'u32[144,128]{1,0:T(1,128)}', space=vmem, size = 0x12000, scoped, tag = 'internal scratch']
  %s0 = inlined_call_operand.vmem [shape: f32[16,128], index: 0, kind: input, shape index: {}]
  %s1 = inlined_call_operand.vmem [shape: f32[16,128], index: 1, kind: input, shape index: {}]
  %s2 = inlined_call_operand.vmem [shape: f32[8,128], index: 2, kind: output, shape index: {}]
  %s3 = sld [smem:[#allocation0]]
  $region22: #{embedder_loss.1} parent=0
    _
  %s5 = ssub.s32 1, %s3
  %s6 = scalar_select 0, %s5, %s3
  // Predicated region
  $region2: #{embedder_loss.1} parent=0 // pred_check
    _
  $region3: #{embedder_loss.1} parent=0 // pred_check_branch
    %8 = sbr.rel (0) target = $region5
  $region4: #{embedder_loss.1} parent=0 // pred_region
    %s9 = sadd.s32 0, 0
    %s10 = smul.u32 2, %s9
    %p11 = scmp.lt.s32.totalorder %s10, 1
    %s12 = scalar_select %p11, %s10, 1
    %s13 = smul.addr %s12, 8
    %s14 = scalar_lea.vmem %s0, %s13
    %s15 = sadd.s32 0, 0
    %s16 = smul.u32 2, %s15
  $region5: #{embedder_loss.1} parent=0 // pred_fallthru
    _
  // Predicated region
  $region6: #{embedder_loss.1} parent=0 // pred_check
    _
  $region7: #{embedder_loss.1} parent=0 // pred_check_branch
    %18 = sbr.rel (0) target = $region9
  $region8: #{embedder_loss.1} parent=0 // pred_region
    %s19 = sadd.s32 0, 0
    %s20 = smul.u32 2, %s19
    %p21 = scmp.lt.s32.totalorder %s20, 1
    %s22 = scalar_select %p21, %s20, 1
    %s23 = smul.addr %s22, 8
    %s24 = scalar_lea.vmem %s1, %s23
    %s25 = sadd.s32 0, 0
    %s26 = smul.u32 2, %s25
  $region9: #{embedder_loss.1} parent=0 // pred_fallthru
    _
  %s27 = sadd.s32 0, 0
  %s28 = smul.u32 2, %s27
  %p29 = scmp.lt.s32.totalorder %s28, 1
  %s30 = scalar_select %p29, %s28, 1
  %s31 = smul.addr %s30, 8
  %s32 = scalar_lea.vmem %s0, %s31
  %s33 = sadd.s32 0, 0
  %s34 = smul.u32 2, %s33
  %p35 = scmp.lt.s32.totalorder %s34, 1
  %s36 = scalar_select %p35, %s34, 1
  %s37 = smul.addr %s36, 8
  %s38 = scalar_lea.vmem %s1, %s37
  %s39 = sadd.s32 0, 0
  %s40 = smul.u32 2, %s39
  %p41 = scmp.lt.s32.totalorder %s40, 1
  %s42 = scalar_select %p41, %s40, 1
  %s43 = smul.addr %s42, 8
  %s44 = scalar_lea.vmem %s0, %s43
  %s45 = sadd.s32 0, 0
  %s46 = smul.u32 2, %s45
  %s47 = sadd.s32 0, 0
  %s48 = smul.u32 2, %s47
  %p49 = scmp.lt.s32.totalorder %s48, 1
  %s50 = scalar_select %p49, %s48, 1
  %s51 = smul.addr %s50, 8
  %s52 = scalar_lea.vmem %s1, %s51
  %s53 = sadd.s32 0, 0
  %s54 = smul.u32 2, %s53
  %p55 = scmp.eq.s32.totalorder 0, 0
  // Predicated region
  $region10: #{embedder_loss.1} parent=0 // pred_check
    %p56 = pneg %p55
  $region11: #{embedder_loss.1} parent=0 // pred_check_branch
    %58 = sbr.rel (%p56) target = $region13
  $region12: #{embedder_loss.1} parent=0 // pred_region
    %59 = vst [vmem:[%s2] sm:$0xff] 0.0
  $region13: #{embedder_loss.1} parent=0 // pred_fallthru
    _
  %v60 = vld [vmem:[%s44] sm:$0xff]
  %v61 = vld [vmem:[%s44 + $0x8] sm:$0xff]
  %v62 = vld [vmem:[%s52] sm:$0xff]
  %v63 = vld [vmem:[%s52 + $0x8] sm:$0xff]
  %v64 = vsub.f32 %v60, %v62
  %v65 = vsub.f32 %v61, %v63
  %v66 = vmul.f32 %v64, %v64
  %v67 = vmul.f32 %v65, %v65
  %v68 = vadd.f32 %v66, %v67
  %v69 = vadd.f32 %v68, 0.0
  %v70 = vld [vmem:[%s2] sm:$0xff]
  %v71 = vadd.f32 %v70, %v69
  %72 = vst [vmem:[%s2] sm:$0xff] %v71
  // Predicated region
  $region14: #{embedder_loss.1} parent=0 // pred_check
    _
  $region15: #{embedder_loss.1} parent=0 // pred_check_branch
    %74 = sbr.rel (0) target = $region17
  $region16: #{embedder_loss.1} parent=0 // pred_region
    _
  $region17: #{embedder_loss.1} parent=0 // pred_fallthru
    _
  // Predicated region
  $region18: #{embedder_loss.1} parent=0 // pred_check
    _
  $region19: #{embedder_loss.1} parent=0 // pred_check_branch
    %76 = sbr.rel (0) target = $region21
  $region20: #{embedder_loss.1} parent=0 // pred_region
    _
  $region21: #{embedder_loss.1} parent=0 // pred_fallthru
    _

</llo_original>
